<compile_context>
chip_gen: v7x
topology: tpu7x:2x2x1
jax: 0.10.0
libtpu: 0.0.40
codegen_flags: <defaults>
</compile_context>

<pallas_src>
import math

import jax
import jax.numpy as jnp
from jax.experimental import pallas as pl
from jax.experimental.pallas import tpu as pltpu


def attn_kernel(mask_ref, q_ref, k_ref, v_ref, o_ref):
    # mask_ref: (1,) f32 in SMEM (scalar prefetch)
    # q_ref/o_ref: (TQ, D) tile of queries / outputs for this grid step
    # k_ref/v_ref: (S, D) full key/value tiles (resident across query blocks)
    q = q_ref[...]
    k = k_ref[...]
    v = v_ref[...]

    d = k_ref.shape[-1]
    scale = 1.0 / math.sqrt(d)

    # scores = (q @ k^T) * scale + attn_mask; contraction over D without
    # materializing k.T (transposed-RHS dot_general feeds the MXU directly).
    s = jax.lax.dot_general(
        q, k,
        dimension_numbers=(((1,), (1,)), ((), ())),
        preferred_element_type=jnp.float32,
    )
    s = s * scale + mask_ref[0]

    # numerically-stable softmax over keys
    m = jnp.max(s, axis=-1, keepdims=True)
    p = jnp.exp(s - m)
    denom = jnp.sum(p, axis=-1, keepdims=True)
    aw = p * pl.reciprocal(denom, approx=True)

    # output = aw @ v
    o_ref[...] = jnp.dot(aw, v, preferred_element_type=jnp.float32).astype(o_ref.dtype)


def _default_tq(S):
    """Pick the query-block size per chip generation.

    v7x has 2 TensorCores per chip -> give each core one query block.
    v5e/v6e are single-TC -> one grid step minimizes fixed per-step overhead.
    """
    try:
        kind = jax.devices()[0].device_kind.lower()
    except Exception:
        kind = ""
    if "v7" in kind and S % 2 == 0 and (S // 2) % 8 == 0:
        return S // 2
    return S


def sdpa_pallas(q, k, v, attn_mask, *, tq=None):
    """q, k, v: (B, S, D) float32; attn_mask: additive scalar."""
    B, S, D = q.shape
    if tq is None:
        tq = _default_tq(S)
    tq = min(tq, S)
    assert S % tq == 0

    mask_arr = jnp.asarray(attn_mask, dtype=jnp.float32).reshape((1,))

    # Advisory cost: 2 matmuls (2*S*S*D flops each), S*S exps, q/k/v/out I/O.
    cost = pl.CostEstimate(
        flops=4 * B * S * S * D,
        transcendentals=B * S * S,
        bytes_accessed=4 * B * S * D * 4,
    )

    return pl.pallas_call(
        attn_kernel,
        out_shape=jax.ShapeDtypeStruct((B, S, D), q.dtype),
        grid_spec=pltpu.PrefetchScalarGridSpec(
            num_scalar_prefetch=1,
            # Query-block axis leads so it is the axis the core partitioner
            # shards across TensorCores (v7x); batch trails.
            grid=(S // tq, B),
            in_specs=[
                # q: one (tq, D) row-block per grid step
                pl.BlockSpec((pl.Squeezed(), tq, D), lambda i, b, m: (b, i, 0)),
                # k, v: full (S, D) tiles, same block across query steps
                pl.BlockSpec((pl.Squeezed(), S, D), lambda i, b, m: (b, 0, 0)),
                pl.BlockSpec((pl.Squeezed(), S, D), lambda i, b, m: (b, 0, 0)),
            ],
            out_specs=pl.BlockSpec((pl.Squeezed(), tq, D), lambda i, b, m: (b, i, 0)),
        ),
        compiler_params=pltpu.CompilerParams(
            dimension_semantics=("parallel", "parallel"),
        ),
        cost_estimate=cost,
    )(mask_arr, q, k, v)


def sdpa_ref(q, k, v, attn_mask):
    d = k.shape[-1]
    s = jnp.einsum("bqd,bkd->bqk", q, k) / math.sqrt(d) + attn_mask
    aw = jax.nn.softmax(s, axis=-1)
    return jnp.einsum("bqk,bkd->bqd", aw, v)


if __name__ == "__main__":
    key = jax.random.PRNGKey(0)
    kq, kk, kv = jax.random.split(key, 3)

    B, S, D = 1, 64, 512
    q = jax.random.normal(kq, (B, S, D), dtype=jnp.float32)
    k = jax.random.normal(kk, (B, S, D), dtype=jnp.float32)
    v = jax.random.normal(kv, (B, S, D), dtype=jnp.float32)
    attn_mask = 1.0  # scalar additive mask, same as the PyTorch module

    out = sdpa_pallas(q, k, v, attn_mask)
    out = jax.block_until_ready(out)

    ref = sdpa_ref(q, k, v, attn_mask)
    assert out.shape == (B, S, D)
    # approx reciprocal (EUP vrcp) is accurate to ~1e-4 relative; use a
    # slightly looser tolerance than exact-f32.
    assert jnp.allclose(out, ref, atol=2e-3, rtol=2e-3), "mismatch vs reference"

    print("KERNEL_OK")
</pallas_src>

<mosaic_0001>
module attributes {stable_mosaic.version = 11 : i64} {
  func.func @attn_kernel(%arg0: i32, %arg1: i32, %arg2: memref<1xf32, #tpu.memory_space<smem>>, %arg3: memref<1x64x512xf32, #tpu.memory_space<vmem>>, %arg4: memref<1x64x512xf32, #tpu.memory_space<vmem>>, %arg5: memref<1x64x512xf32, #tpu.memory_space<vmem>>, %arg6: memref<1x64x512xf32, #tpu.memory_space<vmem>>) attributes {dimension_semantics = [#tpu.dimension_semantics<parallel>, #tpu.dimension_semantics<parallel>], iteration_bounds = array<i64: 1, 1>, scalar_prefetch = 1 : i64, scratch_operands = 0 : i64, tpu.core_type = #tpu.core_type<tc>, window_params = [{transform_indices = @transform_0, window_bounds = array<i64: 1, 64, 512>}, {transform_indices = @transform_1, window_bounds = array<i64: 1, 64, 512>}, {transform_indices = @transform_2, window_bounds = array<i64: 1, 64, 512>}, {transform_indices = @transform_3, window_bounds = array<i64: 1, 64, 512>}]} {
    %c0 = arith.constant 0 : index
    %c0_0 = arith.constant 0 : index
    %c0_1 = arith.constant 0 : index
    %0 = vector.load %arg3[%c0, %c0_0, %c0_1] : memref<1x64x512xf32, #tpu.memory_space<vmem>>, vector<1x64x512xf32>
    %1 = vector.shape_cast %0 : vector<1x64x512xf32> to vector<64x512xf32>
    %c0_2 = arith.constant 0 : index
    %c0_3 = arith.constant 0 : index
    %c0_4 = arith.constant 0 : index
    %2 = vector.load %arg4[%c0_2, %c0_3, %c0_4] : memref<1x64x512xf32, #tpu.memory_space<vmem>>, vector<1x64x512xf32>
    %3 = vector.shape_cast %2 : vector<1x64x512xf32> to vector<64x512xf32>
    %c0_5 = arith.constant 0 : index
    %c0_6 = arith.constant 0 : index
    %c0_7 = arith.constant 0 : index
    %4 = vector.load %arg5[%c0_5, %c0_6, %c0_7] : memref<1x64x512xf32, #tpu.memory_space<vmem>>, vector<1x64x512xf32>
    %5 = vector.shape_cast %4 : vector<1x64x512xf32> to vector<64x512xf32>
    %cst = arith.constant dense<0.000000e+00> : vector<64x64xf32>
    %6 = tpu.matmul %1, %3, %cst {dimension_numbers = #tpu.dot_dimension_numbers<[1], [1], [0], [0], [0, 0, 1, 0], [], []>} : vector<64x512xf32>, vector<64x512xf32>, vector<64x64xf32> -> vector<64x64xf32>
    %cst_8 = arith.constant 0.0441941731 : f32
    %7 = vector.broadcast %cst_8 : f32 to vector<64x64xf32>
    %8 = arith.mulf %6, %7 : vector<64x64xf32>
    %c0_9 = arith.constant 0 : index
    %9 = memref.load %arg2[%c0_9] : memref<1xf32, #tpu.memory_space<smem>>
    %10 = vector.broadcast %9 : f32 to vector<64x64xf32>
    %11 = arith.addf %8, %10 : vector<64x64xf32>
    %cst_10 = arith.constant dense<0xFF800000> : vector<64xf32>
    %12 = vector.multi_reduction <maximumf>, %11, %cst_10 [1] : vector<64x64xf32> to vector<64xf32>
    %13 = vector.shape_cast %12 : vector<64xf32> to vector<64x1xf32>
    %14 = vector.broadcast %13 : vector<64x1xf32> to vector<64x64xf32>
    %15 = arith.subf %11, %14 : vector<64x64xf32>
    %16 = math.exp %15 : vector<64x64xf32>
    %cst_11 = arith.constant dense<0.000000e+00> : vector<64xf32>
    %17 = vector.multi_reduction <add>, %16, %cst_11 [1] : vector<64x64xf32> to vector<64xf32>
    %18 = vector.shape_cast %17 : vector<64xf32> to vector<64x1xf32>
    %19 = tpu.reciprocal %18 {approx = true} : vector<64x1xf32> -> vector<64x1xf32>
    %20 = vector.broadcast %19 : vector<64x1xf32> to vector<64x64xf32>
    %21 = arith.mulf %16, %20 : vector<64x64xf32>
    %cst_12 = arith.constant dense<0.000000e+00> : vector<64x512xf32>
    %22 = tpu.matmul %21, %5, %cst_12 {dimension_numbers = #tpu.dot_dimension_numbers<[1], [0], [0], [1], [0, 0, 1, 1], [], []>} : vector<64x64xf32>, vector<64x512xf32>, vector<64x512xf32> -> vector<64x512xf32>
    %c0_13 = arith.constant 0 : index
    %c0_14 = arith.constant 0 : index
    %c0_15 = arith.constant 0 : index
    %23 = vector.load %arg6[%c0_13, %c0_14, %c0_15] : memref<1x64x512xf32, #tpu.memory_space<vmem>>, vector<1x64x512xf32>
    %24 = vector.shape_cast %23 : vector<1x64x512xf32> to vector<64x512xf32>
    %25 = vector.shape_cast %22 : vector<64x512xf32> to vector<1x64x512xf32>
    tpu.vector_store %arg6[%c0_13, %c0_14, %c0_15], %25 {strides = array<i32>} : memref<1x64x512xf32, #tpu.memory_space<vmem>>, vector<1x64x512xf32>,
    return
  }
  func.func @transform_0(%arg0: i32, %arg1: i32, %arg2: memref<1xf32, #tpu.memory_space<smem>>) -> (i32, i32, i32) {
    %c0_i32 = arith.constant 0 : i32
    %c0_i32_0 = arith.constant 0 : i32
    return %arg1, %arg0, %c0_i32 : i32, i32, i32
  }
  func.func @transform_1(%arg0: i32, %arg1: i32, %arg2: memref<1xf32, #tpu.memory_space<smem>>) -> (i32, i32, i32) {
    %c0_i32 = arith.constant 0 : i32
    %c0_i32_0 = arith.constant 0 : i32
    %c0_i32_1 = arith.constant 0 : i32
    return %arg1, %c0_i32, %c0_i32_0 : i32, i32, i32
  }
  func.func @transform_2(%arg0: i32, %arg1: i32, %arg2: memref<1xf32, #tpu.memory_space<smem>>) -> (i32, i32, i32) {
    %c0_i32 = arith.constant 0 : i32
    %c0_i32_0 = arith.constant 0 : i32
    %c0_i32_1 = arith.constant 0 : i32
    return %arg1, %c0_i32, %c0_i32_0 : i32, i32, i32
  }
  func.func @transform_3(%arg0: i32, %arg1: i32, %arg2: memref<1xf32, #tpu.memory_space<smem>>) -> (i32, i32, i32) {
    %c0_i32 = arith.constant 0 : i32
    %c0_i32_0 = arith.constant 0 : i32
    return %arg1, %arg0, %c0_i32 : i32, i32, i32
  }
}

</mosaic_0001>

<llo_original>
// kernel: tpu_custom_call.1
$region0: #{tpu_custom_call.1}
  #allocation0 [shape = 'u32[]', space=smem, size = 0x4, offset = 0x4, fixed_abs, tag = 'smem constant byte address 0x4 - core index']
  #allocation1 [shape = 'u32[144,128]{1,0:T(1,128)}', space=vmem, size = 0x12000, scoped, tag = 'internal scratch']
  #allocation2 [shape = 's32[1]{0}', space=sflag, size = 0x4, scoped, tag = 'scoped memory for tpu_custom_call.1']
  #allocation3 [shape = 'f32[1]{0:T(128)S(6)}', space=smem, size = 0x200, scoped, tag = 'prefetched SMEM operand 0']
  %s0 = inlined_call_operand.<no memory space> [shape: f32[1], index: 0, kind: input, shape index: {}]
  %s1 = inlined_call_operand.hbm [shape: f32[1,64,512], index: 1, kind: input, shape index: {}]
  %s2 = inlined_call_operand.hbm [shape: f32[1,64,512], index: 2, kind: input, shape index: {}]
  %s3 = inlined_call_operand.hbm [shape: f32[1,64,512], index: 3, kind: input, shape index: {}]
  %s4 = inlined_call_operand.hbm [shape: f32[1,64,512], index: 4, kind: output, shape index: {}]
  %s5 = sld [smem:[#allocation0]]
  $region34: #{tpu_custom_call.1} parent=0
    _
  %s7 = ssub.s32 1, %s5
  %s8 = scalar_select 0, %s7, %s5
  %9 = sst [smem:[#allocation3]] %s0
  $region1: #{tpu_custom_call.1} parent=0
    #allocation4 [shape = 'u8[131072]{0}', space=vmem, size = 0x20000, scoped, tag = 'input window, operand 1, single buffered']
    #allocation5 [shape = 's32[1]{0}', space=sflag, size = 0x4, scoped, tag = 'scoped memory for tpu_custom_call.1']
    #allocation6 [shape = 's32[1]{0}', space=sflag, size = 0x4, scoped, tag = 'scoped memory for tpu_custom_call.1']
    #allocation7 [shape = 'u8[131072]{0}', space=vmem, size = 0x20000, scoped, tag = 'input window, operand 2, single buffered']
    #allocation8 [shape = 's32[1]{0}', space=sflag, size = 0x4, scoped, tag = 'scoped memory for tpu_custom_call.1']
    #allocation9 [shape = 'u8[131072]{0}', space=vmem, size = 0x20000, scoped, tag = 'input window, operand 3, single buffered']
    #allocation10 [shape = 'u8[131072]{0}', space=vmem, size = 0x20000, scoped, tag = 'output window, operand 0, single buffered']
    %10 = vsyncpa [#allocation5], 0
    %11 = vsyncpa [#allocation8], 0
    %12 = vsyncpa [#allocation6], 0
    // Predicated region
    $region2: #{tpu_custom_call.1} parent=1 // pred_check
      _
    $region3: #{tpu_custom_call.1} parent=1 // pred_check_branch
      %14 = sbr.rel (0) target = $region5
    $region4: #{tpu_custom_call.1} parent=1 // pred_region
      %s16 = ssub.s32 4096, 4096
      %17 = vsyncadd [#allocation5], %s16
      %s18 = sshll.u32 [#allocation4], 4
      %s19 = int_to_ptr.vmem [resolvable:$true] %s18
      %24 = dma.hbm_to_vmem [thread:$0]  %s1, 4096, %s19, [#allocation5], 512, 512, 32
    $region5: #{tpu_custom_call.1} parent=1 // pred_fallthru
      _
    // Predicated region
    $region6: #{tpu_custom_call.1} parent=1 // pred_check
      _
    $region7: #{tpu_custom_call.1} parent=1 // pred_check_branch
      %26 = sbr.rel (0) target = $region9
    $region8: #{tpu_custom_call.1} parent=1 // pred_region
      %s28 = ssub.s32 4096, 4096
      %29 = vsyncadd [#allocation8], %s28
      %s30 = sshll.u32 [#allocation7], 4
      %s31 = int_to_ptr.vmem [resolvable:$true] %s30
      %36 = dma.hbm_to_vmem [thread:$0]  %s2, 4096, %s31, [#allocation8], 512, 512, 32
    $region9: #{tpu_custom_call.1} parent=1 // pred_fallthru
      _
    // Predicated region
    $region10: #{tpu_custom_call.1} parent=1 // pred_check
      _
    $region11: #{tpu_custom_call.1} parent=1 // pred_check_branch
      %38 = sbr.rel (0) target = $region13
    $region12: #{tpu_custom_call.1} parent=1 // pred_region
      %s40 = ssub.s32 4096, 4096
      %41 = vsyncadd [#allocation8], %s40
      %s42 = sshll.u32 [#allocation9], 4
      %s43 = int_to_ptr.vmem [resolvable:$true] %s42
      %48 = dma.hbm_to_vmem [thread:$0]  %s3, 4096, %s43, [#allocation8], 512, 512, 32
    $region13: #{tpu_custom_call.1} parent=1 // pred_fallthru
      _
    // Predicated region
    $region14: #{tpu_custom_call.1} parent=1 // pred_check
      _
    $region15: #{tpu_custom_call.1} parent=1 // pred_check_branch
      %50 = sbr.rel (0) target = $region17
    $region16: #{tpu_custom_call.1} parent=1 // pred_region
      %51 = dma.done [#allocation5], 4096
    $region17: #{tpu_custom_call.1} parent=1 // pred_fallthru
      _
    // Predicated region
    $region18: #{tpu_custom_call.1} parent=1 // pred_check
      _
    $region19: #{tpu_custom_call.1} parent=1 // pred_check_branch
      %53 = sbr.rel (0) target = $region21
    $region20: #{tpu_custom_call.1} parent=1 // pred_region
      %54 = dma.done [#allocation8], 4096
    $region21: #{tpu_custom_call.1} parent=1 // pred_fallthru
      _
    // Predicated region
    $region22: #{tpu_custom_call.1} parent=1 // pred_check
      _
    $region23: #{tpu_custom_call.1} parent=1 // pred_check_branch
      %56 = sbr.rel (0) target = $region25
    $region24: #{tpu_custom_call.1} parent=1 // pred_region
      %57 = dma.done [#allocation8], 4096
    $region25: #{tpu_custom_call.1} parent=1 // pred_fallthru
      _
    %v58 = vld [vmem:[#allocation4] sm:$0xff]
    %v59 = vld [vmem:[#allocation4 + $0x8] sm:$0xff]
    %v60 = vld [vmem:[#allocation4 + $0x10] sm:$0xff]
    %v61 = vld [vmem:[#allocation4 + $0x18] sm:$0xff]
    %v62 = vld [vmem:[#allocation4 + $0x20] sm:$0xff]
    %v63 = vld [vmem:[#allocation4 + $0x28] sm:$0xff]
    %v64 = vld [vmem:[#allocation4 + $0x30] sm:$0xff]
    %v65 = vld [vmem:[#allocation4 + $0x38] sm:$0xff]
    %v66 = vld [vmem:[#allocation4 + $0x40] sm:$0xff]
    %v67 = vld [vmem:[#allocation4 + $0x48] sm:$0xff]
    %v68 = vld [vmem:[#allocation4 + $0x50] sm:$0xff]
    %v69 = vld [vmem:[#allocation4 + $0x58] sm:$0xff]
    %v70 = vld [vmem:[#allocation4 + $0x60] sm:$0xff]
    %v71 = vld [vmem:[#allocation4 + $0x68] sm:$0xff]
    %v72 = vld [vmem:[#allocation4 + $0x70] sm:$0xff]
    %v73 = vld [vmem:[#allocation4 + $0x78] sm:$0xff]
    %v74 = vld [vmem:[#allocation4 + $0x80] sm:$0xff]
    %v75 = vld [vmem:[#allocation4 + $0x88] sm:$0xff]
    %v76 = vld [vmem:[#allocation4 + $0x90] sm:$0xff]
    %v77 = vld [vmem:[#allocation4 + $0x98] sm:$0xff]
    %v78 = vld [vmem:[#allocation4 + $0xa0] sm:$0xff]
    %v79 = vld [vmem:[#allocation4 + $0xa8] sm:$0xff]
    %v80 = vld [vmem:[#allocation4 + $0xb0] sm:$0xff]
    %v81 = vld [vmem:[#allocation4 + $0xb8] sm:$0xff]
    %v82 = vld [vmem:[#allocation4 + $0xc0] sm:$0xff]
    %v83 = vld [vmem:[#allocation4 + $0xc8] sm:$0xff]
    %v84 = vld [vmem:[#allocation4 + $0xd0] sm:$0xff]
    %v85 = vld [vmem:[#allocation4 + $0xd8] sm:$0xff]
    %v86 = vld [vmem:[#allocation4 + $0xe0] sm:$0xff]
    %v87 = vld [vmem:[#allocation4 + $0xe8] sm:$0xff]
    %v88 = vld [vmem:[#allocation4 + $0xf0] sm:$0xff]
    %v89 = vld [vmem:[#allocation4 + $0xf8] sm:$0xff]
    %v90 = vld [vmem:[#allocation7] sm:$0xff]
    %v91 = vld [vmem:[#allocation7 + $0x8] sm:$0xff]
    %v92 = vld [vmem:[#allocation7 + $0x10] sm:$0xff]
    %v93 = vld [vmem:[#allocation7 + $0x18] sm:$0xff]
    %v94 = vld [vmem:[#allocation7 + $0x20] sm:$0xff]
    %v95 = vld [vmem:[#allocation7 + $0x28] sm:$0xff]
    %v96 = vld [vmem:[#allocation7 + $0x30] sm:$0xff]
    %v97 = vld [vmem:[#allocation7 + $0x38] sm:$0xff]
    %v98 = vld [vmem:[#allocation7 + $0x40] sm:$0xff]
    %v99 = vld [vmem:[#allocation7 + $0x48] sm:$0xff]
    %v100 = vld [vmem:[#allocation7 + $0x50] sm:$0xff]
    %v101 = vld [vmem:[#allocation7 + $0x58] sm:$0xff]
    %v102 = vld [vmem:[#allocation7 + $0x60] sm:$0xff]
    %v103 = vld [vmem:[#allocation7 + $0x68] sm:$0xff]
    %v104 = vld [vmem:[#allocation7 + $0x70] sm:$0xff]
    %v105 = vld [vmem:[#allocation7 + $0x78] sm:$0xff]
    %v106 = vld [vmem:[#allocation7 + $0x80] sm:$0xff]
    %v107 = vld [vmem:[#allocation7 + $0x88] sm:$0xff]
    %v108 = vld [vmem:[#allocation7 + $0x90] sm:$0xff]
    %v109 = vld [vmem:[#allocation7 + $0x98] sm:$0xff]
    %v110 = vld [vmem:[#allocation7 + $0xa0] sm:$0xff]
    %v111 = vld [vmem:[#allocation7 + $0xa8] sm:$0xff]
    %v112 = vld [vmem:[#allocation7 + $0xb0] sm:$0xff]
    %v113 = vld [vmem:[#allocation7 + $0xb8] sm:$0xff]
    %v114 = vld [vmem:[#allocation7 + $0xc0] sm:$0xff]
    %v115 = vld [vmem:[#allocation7 + $0xc8] sm:$0xff]
    %v116 = vld [vmem:[#allocation7 + $0xd0] sm:$0xff]
    %v117 = vld [vmem:[#allocation7 + $0xd8] sm:$0xff]
    %v118 = vld [vmem:[#allocation7 + $0xe0] sm:$0xff]
    %v119 = vld [vmem:[#allocation7 + $0xe8] sm:$0xff]
    %v120 = vld [vmem:[#allocation7 + $0xf0] sm:$0xff]
    %v121 = vld [vmem:[#allocation7 + $0xf8] sm:$0xff]
    %v122 = vld [vmem:[#allocation9] sm:$0xff]
    %v123 = vld [vmem:[#allocation9 + $0x8] sm:$0xff]
    %v124 = vld [vmem:[#allocation9 + $0x10] sm:$0xff]
    %v125 = vld [vmem:[#allocation9 + $0x18] sm:$0xff]
    %v126 = vld [vmem:[#allocation9 + $0x20] sm:$0xff]
    %v127 = vld [vmem:[#allocation9 + $0x28] sm:$0xff]
    %v128 = vld [vmem:[#allocation9 + $0x30] sm:$0xff]
    %v129 = vld [vmem:[#allocation9 + $0x38] sm:$0xff]
    %v130 = vld [vmem:[#allocation9 + $0x40] sm:$0xff]
    %v131 = vld [vmem:[#allocation9 + $0x48] sm:$0xff]
    %v132 = vld [vmem:[#allocation9 + $0x50] sm:$0xff]
    %v133 = vld [vmem:[#allocation9 + $0x58] sm:$0xff]
    %v134 = vld [vmem:[#allocation9 + $0x60] sm:$0xff]
    %v135 = vld [vmem:[#allocation9 + $0x68] sm:$0xff]
    %v136 = vld [vmem:[#allocation9 + $0x70] sm:$0xff]
    %v137 = vld [vmem:[#allocation9 + $0x78] sm:$0xff]
    %v138 = vld [vmem:[#allocation9 + $0x80] sm:$0xff]
    %v139 = vld [vmem:[#allocation9 + $0x88] sm:$0xff]
    %v140 = vld [vmem:[#allocation9 + $0x90] sm:$0xff]
    %v141 = vld [vmem:[#allocation9 + $0x98] sm:$0xff]
    %v142 = vld [vmem:[#allocation9 + $0xa0] sm:$0xff]
    %v143 = vld [vmem:[#allocation9 + $0xa8] sm:$0xff]
    %v144 = vld [vmem:[#allocation9 + $0xb0] sm:$0xff]
    %v145 = vld [vmem:[#allocation9 + $0xb8] sm:$0xff]
    %v146 = vld [vmem:[#allocation9 + $0xc0] sm:$0xff]
    %v147 = vld [vmem:[#allocation9 + $0xc8] sm:$0xff]
    %v148 = vld [vmem:[#allocation9 + $0xd0] sm:$0xff]
    %v149 = vld [vmem:[#allocation9 + $0xd8] sm:$0xff]
    %v150 = vld [vmem:[#allocation9 + $0xe0] sm:$0xff]
    %v151 = vld [vmem:[#allocation9 + $0xe8] sm:$0xff]
    %v152 = vld [vmem:[#allocation9 + $0xf0] sm:$0xff]
    %v153 = vld [vmem:[#allocation9 + $0xf8] sm:$0xff]
    %154 = vmatprep.subr.mxu0 %v91
    %155 = vmatpush1.xpose.msra.mxu0 %v90
    %156 = vmatprep.subr.mxu0 %v95
    %157 = vmatpush1.xpose.msra.mxu0 %v94
    %158 = vmatprep.subr.mxu0 %v99
    %159 = vmatpush1.xpose.msra.mxu0 %v98
    %160 = vmatprep.subr.mxu0 %v103
    %161 = vmatpush1.xpose.msra.mxu0 %v102
    %162 = vmatprep.subr.mxu0 %v107
    %163 = vmatpush1.xpose.msra.mxu0 %v106
    %164 = vmatprep.subr.mxu0 %v111
    %165 = vmatpush1.xpose.msra.mxu0 %v110
    %166 = vmatprep.subr.mxu0 %v115
    %167 = vmatpush1.xpose.msra.mxu0 %v114
    %168 = vmatprep.subr.mxu0 %v119
    %169 = vmatpush1.xpose.msra.mxu0 %v118
    %170 = vmatprep.subr.mxu0 0.0
    %171 = vmatpush1.xpose.msra.mxu0 0.0
    %172 = vmatprep.subr.mxu0 0.0
    %173 = vmatpush1.xpose.msra.mxu0 0.0
    %174 = vmatprep.subr.mxu0 0.0
    %175 = vmatpush1.xpose.msra.mxu0 0.0
    %176 = vmatprep.subr.mxu0 0.0
    %177 = vmatpush1.xpose.msra.mxu0 0.0
    %178 = vmatprep.subr.mxu0 0.0
    %179 = vmatpush1.xpose.msra.mxu0 0.0
    %180 = vmatprep.subr.mxu0 0.0
    %181 = vmatpush1.xpose.msra.mxu0 0.0
    %182 = vmatprep.subr.mxu0 0.0
    %183 = vmatpush1.xpose.msra.mxu0 0.0
    %184 = vmatprep.subr.mxu0 0.0
    %185 = vmatpush1.xpose.msra.mxu0 0.0
    %186 = vmatprep.subr.mxu0 0.0
    %187 = vmatpush1.xpose.msra.mxu0 0.0
    %188 = vmatprep.subr.mxu0 0.0
    %189 = vmatpush1.xpose.msra.mxu0 0.0
    %190 = vmatprep.subr.mxu0 0.0
    %191 = vmatpush1.xpose.msra.mxu0 0.0
    %192 = vmatprep.subr.mxu0 0.0
    %193 = vmatpush1.xpose.msra.mxu0 0.0
    %194 = vmatprep.subr.mxu0 0.0
    %195 = vmatpush1.xpose.msra.mxu0 0.0
    %196 = vmatprep.subr.mxu0 0.0
    %197 = vmatpush1.xpose.msra.mxu0 0.0
    %198 = vmatprep.subr.mxu0 0.0
    %199 = vmatpush1.xpose.msra.mxu0 0.0
    %200 = vmatprep.subr.mxu0 0.0
    %201 = vmatpush1.xpose.msra.mxu0 0.0
    %202 = vmatprep.subr.mxu0 0.0
    %203 = vmatpush1.xpose.msra.mxu0 0.0
    %204 = vmatprep.subr.mxu0 0.0
    %205 = vmatpush1.xpose.msra.mxu0 0.0
    %206 = vmatprep.subr.mxu0 0.0
    %207 = vmatpush1.xpose.msra.mxu0 0.0
    %208 = vmatprep.subr.mxu0 0.0
    %209 = vmatpush1.xpose.msra.mxu0 0.0
    %210 = vmatprep.subr.mxu0 0.0
    %211 = vmatpush1.xpose.msra.mxu0 0.0
    %212 = vmatprep.subr.mxu0 0.0
    %213 = vmatpush1.xpose.msra.mxu0 0.0
    %214 = vmatprep.subr.mxu0 0.0
    %215 = vmatpush1.xpose.msra.mxu0 0.0
    %216 = vmatprep.subr.mxu0 0.0
    %217 = vmatpush1.xpose.msra.mxu0 0.0
    %218 = vmatprep.mubr.f32.mxu0 %v59
    %219 = vmatmul.mubr.f32.gmra.mrb[0].mxu0 %v58
    %v220 = vpop.f32.mrb[0].mxu0
    %v221 = vadd.f32 0.0, %v220
    %v222 = vpop.f32.mrb[0].mxu0
    %223 = vmatprep.mubr.f32.mxu0 %v63
    %224 = vmatmul.mubr.f32.gmra.mrb[0].mxu0 %v62
    %v225 = vpop.f32.mrb[0].mxu0
    %v226 = vadd.f32 0.0, %v225
    %v227 = vpop.f32.mrb[0].mxu0
    %228 = vmatprep.mubr.f32.mxu0 %v67
    %229 = vmatmul.mubr.f32.gmra.mrb[0].mxu0 %v66
    %v230 = vpop.f32.mrb[0].mxu0
    %v231 = vadd.f32 0.0, %v230
    %v232 = vpop.f32.mrb[0].mxu0
    %233 = vmatprep.mubr.f32.mxu0 %v71
    %234 = vmatmul.mubr.f32.gmra.mrb[0].mxu0 %v70
    %v235 = vpop.f32.mrb[0].mxu0
    %v236 = vadd.f32 0.0, %v235
    %v237 = vpop.f32.mrb[0].mxu0
    %238 = vmatprep.mubr.f32.mxu0 %v75
    %239 = vmatmul.mubr.f32.gmra.mrb[0].mxu0 %v74
    %v240 = vpop.f32.mrb[0].mxu0
    %v241 = vadd.f32 0.0, %v240
    %v242 = vpop.f32.mrb[0].mxu0
    %243 = vmatprep.mubr.f32.mxu0 %v79
    %244 = vmatmul.mubr.f32.gmra.mrb[0].mxu0 %v78
    %v245 = vpop.f32.mrb[0].mxu0
    %v246 = vadd.f32 0.0, %v245
    %v247 = vpop.f32.mrb[0].mxu0
    %248 = vmatprep.mubr.f32.mxu0 %v83
    %249 = vmatmul.mubr.f32.gmra.mrb[0].mxu0 %v82
    %v250 = vpop.f32.mrb[0].mxu0
    %v251 = vadd.f32 0.0, %v250
    %v252 = vpop.f32.mrb[0].mxu0
    %253 = vmatprep.mubr.f32.mxu0 %v87
    %254 = vmatmul.mubr.f32.gmra.mrb[0].mxu0 %v86
    %v255 = vpop.f32.mrb[0].mxu0
    %v256 = vadd.f32 0.0, %v255
    %v257 = vpop.f32.mrb[0].mxu0
    %258 = vdwg.mxu0
    %259 = vmatprep.subr.mxu0 %v93
    %260 = vmatpush1.xpose.msra.mxu0 %v92
    %261 = vmatprep.subr.mxu0 %v97
    %262 = vmatpush1.xpose.msra.mxu0 %v96
    %263 = vmatprep.subr.mxu0 %v101
    %264 = vmatpush1.xpose.msra.mxu0 %v100
    %265 = vmatprep.subr.mxu0 %v105
    %266 = vmatpush1.xpose.msra.mxu0 %v104
    %267 = vmatprep.subr.mxu0 %v109
    %268 = vmatpush1.xpose.msra.mxu0 %v108
    %269 = vmatprep.subr.mxu0 %v113
    %270 = vmatpush1.xpose.msra.mxu0 %v112
    %271 = vmatprep.subr.mxu0 %v117
    %272 = vmatpush1.xpose.msra.mxu0 %v116
    %273 = vmatprep.subr.mxu0 %v121
    %274 = vmatpush1.xpose.msra.mxu0 %v120
    %275 = vmatprep.subr.mxu0 0.0
    %276 = vmatpush1.xpose.msra.mxu0 0.0
    %277 = vmatprep.subr.mxu0 0.0
    %278 = vmatpush1.xpose.msra.mxu0 0.0
    %279 = vmatprep.subr.mxu0 0.0
    %280 = vmatpush1.xpose.msra.mxu0 0.0
    %281 = vmatprep.subr.mxu0 0.0
    %282 = vmatpush1.xpose.msra.mxu0 0.0
    %283 = vmatprep.subr.mxu0 0.0
    %284 = vmatpush1.xpose.msra.mxu0 0.0
    %285 = vmatprep.subr.mxu0 0.0
    %286 = vmatpush1.xpose.msra.mxu0 0.0
    %287 = vmatprep.subr.mxu0 0.0
    %288 = vmatpush1.xpose.msra.mxu0 0.0
    %289 = vmatprep.subr.mxu0 0.0
    %290 = vmatpush1.xpose.msra.mxu0 0.0
    %291 = vmatprep.subr.mxu0 0.0
    %292 = vmatpush1.xpose.msra.mxu0 0.0
    %293 = vmatprep.subr.mxu0 0.0
    %294 = vmatpush1.xpose.msra.mxu0 0.0
    %295 = vmatprep.subr.mxu0 0.0
    %296 = vmatpush1.xpose.msra.mxu0 0.0
    %297 = vmatprep.subr.mxu0 0.0
    %298 = vmatpush1.xpose.msra.mxu0 0.0
    %299 = vmatprep.subr.mxu0 0.0
    %300 = vmatpush1.xpose.msra.mxu0 0.0
    %301 = vmatprep.subr.mxu0 0.0
    %302 = vmatpush1.xpose.msra.mxu0 0.0
    %303 = vmatprep.subr.mxu0 0.0
    %304 = vmatpush1.xpose.msra.mxu0 0.0
    %305 = vmatprep.subr.mxu0 0.0
    %306 = vmatpush1.xpose.msra.mxu0 0.0
    %307 = vmatprep.subr.mxu0 0.0
    %308 = vmatpush1.xpose.msra.mxu0 0.0
    %309 = vmatprep.subr.mxu0 0.0
    %310 = vmatpush1.xpose.msra.mxu0 0.0
    %311 = vmatprep.subr.mxu0 0.0
    %312 = vmatpush1.xpose.msra.mxu0 0.0
    %313 = vmatprep.subr.mxu0 0.0
    %314 = vmatpush1.xpose.msra.mxu0 0.0
    %315 = vmatprep.subr.mxu0 0.0
    %316 = vmatpush1.xpose.msra.mxu0 0.0
    %317 = vmatprep.subr.mxu0 0.0
    %318 = vmatpush1.xpose.msra.mxu0 0.0
    %319 = vmatprep.subr.mxu0 0.0
    %320 = vmatpush1.xpose.msra.mxu0 0.0
    %321 = vmatprep.subr.mxu0 0.0
    %322 = vmatpush1.xpose.msra.mxu0 0.0
    %323 = vmatprep.mubr.f32.mxu0 %v61
    %324 = vmatmul.mubr.f32.gmra.mrb[0].mxu0 %v60
    %v325 = vpop.f32.mrb[0].mxu0
    %v326 = vadd.f32 %v221, %v325
    %v327 = vpop.f32.mrb[0].mxu0
    %328 = vmatprep.mubr.f32.mxu0 %v65
    %329 = vmatmul.mubr.f32.gmra.mrb[0].mxu0 %v64
    %v330 = vpop.f32.mrb[0].mxu0
    %v331 = vadd.f32 %v226, %v330
    %v332 = vpop.f32.mrb[0].mxu0
    %333 = vmatprep.mubr.f32.mxu0 %v69
    %334 = vmatmul.mubr.f32.gmra.mrb[0].mxu0 %v68
    %v335 = vpop.f32.mrb[0].mxu0
    %v336 = vadd.f32 %v231, %v335
    %v337 = vpop.f32.mrb[0].mxu0
    %338 = vmatprep.mubr.f32.mxu0 %v73
    %339 = vmatmul.mubr.f32.gmra.mrb[0].mxu0 %v72
    %v340 = vpop.f32.mrb[0].mxu0
    %v341 = vadd.f32 %v236, %v340
    %v342 = vpop.f32.mrb[0].mxu0
    %343 = vmatprep.mubr.f32.mxu0 %v77
    %344 = vmatmul.mubr.f32.gmra.mrb[0].mxu0 %v76
    %v345 = vpop.f32.mrb[0].mxu0
    %v346 = vadd.f32 %v241, %v345
    %v347 = vpop.f32.mrb[0].mxu0
    %348 = vmatprep.mubr.f32.mxu0 %v81
    %349 = vmatmul.mubr.f32.gmra.mrb[0].mxu0 %v80
    %v350 = vpop.f32.mrb[0].mxu0
    %v351 = vadd.f32 %v246, %v350
    %v352 = vpop.f32.mrb[0].mxu0
    %353 = vmatprep.mubr.f32.mxu0 %v85
    %354 = vmatmul.mubr.f32.gmra.mrb[0].mxu0 %v84
    %v355 = vpop.f32.mrb[0].mxu0
    %v356 = vadd.f32 %v251, %v355
    %v357 = vpop.f32.mrb[0].mxu0
    %358 = vmatprep.mubr.f32.mxu0 %v89
    %359 = vmatmul.mubr.f32.gmra.mrb[0].mxu0 %v88
    %v360 = vpop.f32.mrb[0].mxu0
    %v361 = vadd.f32 %v256, %v360
    %v362 = vpop.f32.mrb[0].mxu0
    %363 = vdwg.mxu0
    %v364 = vmul.f32 %v326, 0.044194173
    %v365 = vmul.f32 %v331, 0.044194173
    %v366 = vmul.f32 %v336, 0.044194173
    %v367 = vmul.f32 %v341, 0.044194173
    %v368 = vmul.f32 %v346, 0.044194173
    %v369 = vmul.f32 %v351, 0.044194173
    %v370 = vmul.f32 %v356, 0.044194173
    %v371 = vmul.f32 %v361, 0.044194173
    %s372 = sld [smem:[#allocation3]]
    %v373 = vstv %s372
    %v374 = vadd.f32 %v364, %v373
    %v375 = vadd.f32 %v365, %v373
    %v376 = vadd.f32 %v366, %v373
    %v377 = vadd.f32 %v367, %v373
    %v378 = vadd.f32 %v368, %v373
    %v379 = vadd.f32 %v369, %v373
    %v380 = vadd.f32 %v370, %v373
    %v381 = vadd.f32 %v371, %v373
    %vm382 = vcmask 523264
    %v383 = vsel %vm382, %v374, -inf
    %384 = vmax.xlane.f32.xlu0 %v383
    %v385 = vpop.xlane.xlu0 %384
    %v386 = vsel %vm382, %v375, -inf
    %387 = vmax.xlane.f32.xlu0 %v386
    %v388 = vpop.xlane.xlu0 %387
    %v389 = vsel %vm382, %v376, -inf
    %390 = vmax.xlane.f32.xlu0 %v389
    %v391 = vpop.xlane.xlu0 %390
    %v392 = vsel %vm382, %v377, -inf
    %393 = vmax.xlane.f32.xlu0 %v392
    %v394 = vpop.xlane.xlu0 %393
    %v395 = vsel %vm382, %v378, -inf
    %396 = vmax.xlane.f32.xlu0 %v395
    %v397 = vpop.xlane.xlu0 %396
    %v398 = vsel %vm382, %v379, -inf
    %399 = vmax.xlane.f32.xlu0 %v398
    %v400 = vpop.xlane.xlu0 %399
    %v401 = vsel %vm382, %v380, -inf
    %402 = vmax.xlane.f32.xlu0 %v401
    %v403 = vpop.xlane.xlu0 %402
    %v404 = vsel %vm382, %v381, -inf
    %405 = vmax.xlane.f32.xlu0 %v404
    %v406 = vpop.xlane.xlu0 %405
    %v407 = vsub.f32 %v374, %v385
    %v408 = vsub.f32 %v375, %v388
    %v409 = vsub.f32 %v376, %v391
    %v410 = vsub.f32 %v377, %v394
    %v411 = vsub.f32 %v378, %v397
    %v412 = vsub.f32 %v379, %v400
    %v413 = vsub.f32 %v380, %v403
    %v414 = vsub.f32 %v381, %v406
    %v415 = vmul.f32 %v407, 1.442695
    %v416 = vpow.pop %v415
    %v417 = vmul.f32 %v408, 1.442695
    %v418 = vpow.pop %v417
    %v419 = vmul.f32 %v409, 1.442695
    %v420 = vpow.pop %v419
    %v421 = vmul.f32 %v410, 1.442695
    %v422 = vpow.pop %v421
    %v423 = vmul.f32 %v411, 1.442695
    %v424 = vpow.pop %v423
    %v425 = vmul.f32 %v412, 1.442695
    %v426 = vpow.pop %v425
    %v427 = vmul.f32 %v413, 1.442695
    %v428 = vpow.pop %v427
    %v429 = vmul.f32 %v414, 1.442695
    %v430 = vpow.pop %v429
    %v431 = vsel %vm382, %v416, 0.0
    %432 = vadd.xlane.f32.xlu0 %v431
    %v433 = vpop.xlane.xlu0 %432
    %v434 = vsel %vm382, %v418, 0.0
    %435 = vadd.xlane.f32.xlu0 %v434
    %v436 = vpop.xlane.xlu0 %435
    %v437 = vsel %vm382, %v420, 0.0
    %438 = vadd.xlane.f32.xlu0 %v437
    %v439 = vpop.xlane.xlu0 %438
    %v440 = vsel %vm382, %v422, 0.0
    %441 = vadd.xlane.f32.xlu0 %v440
    %v442 = vpop.xlane.xlu0 %441
    %v443 = vsel %vm382, %v424, 0.0
    %444 = vadd.xlane.f32.xlu0 %v443
    %v445 = vpop.xlane.xlu0 %444
    %v446 = vsel %vm382, %v426, 0.0
    %447 = vadd.xlane.f32.xlu0 %v446
    %v448 = vpop.xlane.xlu0 %447
    %v449 = vsel %vm382, %v428, 0.0
    %450 = vadd.xlane.f32.xlu0 %v449
    %v451 = vpop.xlane.xlu0 %450
    %v452 = vsel %vm382, %v430, 0.0
    %453 = vadd.xlane.f32.xlu0 %v452
    %v454 = vpop.xlane.xlu0 %453
    %v455 = vrcp.pop %v433
    %v456 = vrcp.pop %v436
    %v457 = vrcp.pop %v439
    %v458 = vrcp.pop %v442
    %v459 = vrcp.pop %v445
    %v460 = vrcp.pop %v448
    %v461 = vrcp.pop %v451
    %v462 = vrcp.pop %v454
    %v463 = vmul.f32 %v416, %v455
    %v464 = vmul.f32 %v418, %v456
    %v465 = vmul.f32 %v420, %v457
    %v466 = vmul.f32 %v422, %v458
    %v467 = vmul.f32 %v424, %v459
    %v468 = vmul.f32 %v426, %v460
    %v469 = vmul.f32 %v428, %v461
    %v470 = vmul.f32 %v430, %v462
    %v472 = vsel %vm382, %v463, 0
    %v475 = vsel %vm382, %v464, 0
    %v478 = vsel %vm382, %v465, 0
    %v481 = vsel %vm382, %v466, 0
    %v484 = vsel %vm382, %v467, 0
    %v487 = vsel %vm382, %v468, 0
    %v490 = vsel %vm382, %v469, 0
    %v493 = vsel %vm382, %v470, 0
    %495 = vmatprep.subr.mxu0 %v123
    %496 = vmatpush1.msra.mxu0 %v122
    %497 = vmatprep.subr.mxu0 %v127
    %498 = vmatpush1.msra.mxu0 %v126
    %499 = vmatprep.subr.mxu0 %v131
    %500 = vmatpush1.msra.mxu0 %v130
    %501 = vmatprep.subr.mxu0 %v135
    %502 = vmatpush1.msra.mxu0 %v134
    %503 = vmatprep.subr.mxu0 %v139
    %504 = vmatpush1.msra.mxu0 %v138
    %505 = vmatprep.subr.mxu0 %v143
    %506 = vmatpush1.msra.mxu0 %v142
    %507 = vmatprep.subr.mxu0 %v147
    %508 = vmatpush1.msra.mxu0 %v146
    %509 = vmatprep.subr.mxu0 %v151
    %510 = vmatpush1.msra.mxu0 %v150
    %511 = vmatprep.subr.mxu0 0.0
    %512 = vmatpush1.msra.mxu0 0.0
    %513 = vmatprep.subr.mxu0 0.0
    %514 = vmatpush1.msra.mxu0 0.0
    %515 = vmatprep.subr.mxu0 0.0
    %516 = vmatpush1.msra.mxu0 0.0
    %517 = vmatprep.subr.mxu0 0.0
    %518 = vmatpush1.msra.mxu0 0.0
    %519 = vmatprep.subr.mxu0 0.0
    %520 = vmatpush1.msra.mxu0 0.0
    %521 = vmatprep.subr.mxu0 0.0
    %522 = vmatpush1.msra.mxu0 0.0
    %523 = vmatprep.subr.mxu0 0.0
    %524 = vmatpush1.msra.mxu0 0.0
    %525 = vmatprep.subr.mxu0 0.0
    %526 = vmatpush1.msra.mxu0 0.0
    %527 = vmatprep.subr.mxu0 0.0
    %528 = vmatpush1.msra.mxu0 0.0
    %529 = vmatprep.subr.mxu0 0.0
    %530 = vmatpush1.msra.mxu0 0.0
    %531 = vmatprep.subr.mxu0 0.0
    %532 = vmatpush1.msra.mxu0 0.0
    %533 = vmatprep.subr.mxu0 0.0
    %534 = vmatpush1.msra.mxu0 0.0
    %535 = vmatprep.subr.mxu0 0.0
    %536 = vmatpush1.msra.mxu0 0.0
    %537 = vmatprep.subr.mxu0 0.0
    %538 = vmatpush1.msra.mxu0 0.0
    %539 = vmatprep.subr.mxu0 0.0
    %540 = vmatpush1.msra.mxu0 0.0
    %541 = vmatprep.subr.mxu0 0.0
    %542 = vmatpush1.msra.mxu0 0.0
    %543 = vmatprep.subr.mxu0 0.0
    %544 = vmatpush1.msra.mxu0 0.0
    %545 = vmatprep.subr.mxu0 0.0
    %546 = vmatpush1.msra.mxu0 0.0
    %547 = vmatprep.subr.mxu0 0.0
    %548 = vmatpush1.msra.mxu0 0.0
    %549 = vmatprep.subr.mxu0 0.0
    %550 = vmatpush1.msra.mxu0 0.0
    %551 = vmatprep.subr.mxu0 0.0
    %552 = vmatpush1.msra.mxu0 0.0
    %553 = vmatprep.subr.mxu0 0.0
    %554 = vmatpush1.msra.mxu0 0.0
    %555 = vmatprep.subr.mxu0 0.0
    %556 = vmatpush1.msra.mxu0 0.0
    %557 = vmatprep.subr.mxu0 0.0
    %558 = vmatpush1.msra.mxu0 0.0
    %559 = vmatprep.mubr.f32.mxu0 0.0
    %560 = vmatmul.mubr.f32.gmra.mrb[0].mxu0 %v472
    %v561 = vpop.f32.mrb[0].mxu0
    %v562 = vadd.f32 0.0, %v561
    %v563 = vpop.f32.mrb[0].mxu0
    %v564 = vadd.f32 0.0, %v563
    %565 = vmatprep.mubr.f32.mxu0 0.0
    %566 = vmatmul.mubr.f32.gmra.mrb[0].mxu0 %v475
    %v567 = vpop.f32.mrb[0].mxu0
    %v568 = vadd.f32 0.0, %v567
    %v569 = vpop.f32.mrb[0].mxu0
    %v570 = vadd.f32 0.0, %v569
    %571 = vmatprep.mubr.f32.mxu0 0.0
    %572 = vmatmul.mubr.f32.gmra.mrb[0].mxu0 %v478
    %v573 = vpop.f32.mrb[0].mxu0
    %v574 = vadd.f32 0.0, %v573
    %v575 = vpop.f32.mrb[0].mxu0
    %v576 = vadd.f32 0.0, %v575
    %577 = vmatprep.mubr.f32.mxu0 0.0
    %578 = vmatmul.mubr.f32.gmra.mrb[0].mxu0 %v481
    %v579 = vpop.f32.mrb[0].mxu0
    %v580 = vadd.f32 0.0, %v579
    %v581 = vpop.f32.mrb[0].mxu0
    %v582 = vadd.f32 0.0, %v581
    %583 = vmatprep.mubr.f32.mxu0 0.0
    %584 = vmatmul.mubr.f32.gmra.mrb[0].mxu0 %v484
    %v585 = vpop.f32.mrb[0].mxu0
    %v586 = vadd.f32 0.0, %v585
    %v587 = vpop.f32.mrb[0].mxu0
    %v588 = vadd.f32 0.0, %v587
    %589 = vmatprep.mubr.f32.mxu0 0.0
    %590 = vmatmul.mubr.f32.gmra.mrb[0].mxu0 %v487
    %v591 = vpop.f32.mrb[0].mxu0
    %v592 = vadd.f32 0.0, %v591
    %v593 = vpop.f32.mrb[0].mxu0
    %v594 = vadd.f32 0.0, %v593
    %595 = vmatprep.mubr.f32.mxu0 0.0
    %596 = vmatmul.mubr.f32.gmra.mrb[0].mxu0 %v490
    %v597 = vpop.f32.mrb[0].mxu0
    %v598 = vadd.f32 0.0, %v597
    %v599 = vpop.f32.mrb[0].mxu0
    %v600 = vadd.f32 0.0, %v599
    %601 = vmatprep.mubr.f32.mxu0 0.0
    %602 = vmatmul.mubr.f32.gmra.mrb[0].mxu0 %v493
    %v603 = vpop.f32.mrb[0].mxu0
    %v604 = vadd.f32 0.0, %v603
    %v605 = vpop.f32.mrb[0].mxu0
    %v606 = vadd.f32 0.0, %v605
    %607 = vdwg.mxu0
    %608 = vmatprep.subr.mxu0 %v125
    %609 = vmatpush1.msra.mxu0 %v124
    %610 = vmatprep.subr.mxu0 %v129
    %611 = vmatpush1.msra.mxu0 %v128
    %612 = vmatprep.subr.mxu0 %v133
    %613 = vmatpush1.msra.mxu0 %v132
    %614 = vmatprep.subr.mxu0 %v137
    %615 = vmatpush1.msra.mxu0 %v136
    %616 = vmatprep.subr.mxu0 %v141
    %617 = vmatpush1.msra.mxu0 %v140
    %618 = vmatprep.subr.mxu0 %v145
    %619 = vmatpush1.msra.mxu0 %v144
    %620 = vmatprep.subr.mxu0 %v149
    %621 = vmatpush1.msra.mxu0 %v148
    %622 = vmatprep.subr.mxu0 %v153
    %623 = vmatpush1.msra.mxu0 %v152
    %624 = vmatprep.subr.mxu0 0.0
    %625 = vmatpush1.msra.mxu0 0.0
    %626 = vmatprep.subr.mxu0 0.0
    %627 = vmatpush1.msra.mxu0 0.0
    %628 = vmatprep.subr.mxu0 0.0
    %629 = vmatpush1.msra.mxu0 0.0
    %630 = vmatprep.subr.mxu0 0.0
    %631 = vmatpush1.msra.mxu0 0.0
    %632 = vmatprep.subr.mxu0 0.0
    %633 = vmatpush1.msra.mxu0 0.0
    %634 = vmatprep.subr.mxu0 0.0
    %635 = vmatpush1.msra.mxu0 0.0
    %636 = vmatprep.subr.mxu0 0.0
    %637 = vmatpush1.msra.mxu0 0.0
    %638 = vmatprep.subr.mxu0 0.0
    %639 = vmatpush1.msra.mxu0 0.0
    %640 = vmatprep.subr.mxu0 0.0
    %641 = vmatpush1.msra.mxu0 0.0
    %642 = vmatprep.subr.mxu0 0.0
    %643 = vmatpush1.msra.mxu0 0.0
    %644 = vmatprep.subr.mxu0 0.0
    %645 = vmatpush1.msra.mxu0 0.0
    %646 = vmatprep.subr.mxu0 0.0
    %647 = vmatpush1.msra.mxu0 0.0
    %648 = vmatprep.subr.mxu0 0.0
    %649 = vmatpush1.msra.mxu0 0.0
    %650 = vmatprep.subr.mxu0 0.0
    %651 = vmatpush1.msra.mxu0 0.0
    %652 = vmatprep.subr.mxu0 0.0
    %653 = vmatpush1.msra.mxu0 0.0
    %654 = vmatprep.subr.mxu0 0.0
    %655 = vmatpush1.msra.mxu0 0.0
    %656 = vmatprep.subr.mxu0 0.0
    %657 = vmatpush1.msra.mxu0 0.0
    %658 = vmatprep.subr.mxu0 0.0
    %659 = vmatpush1.msra.mxu0 0.0
    %660 = vmatprep.subr.mxu0 0.0
    %661 = vmatpush1.msra.mxu0 0.0
    %662 = vmatprep.subr.mxu0 0.0
    %663 = vmatpush1.msra.mxu0 0.0
    %664 = vmatprep.subr.mxu0 0.0
    %665 = vmatpush1.msra.mxu0 0.0
    %666 = vmatprep.subr.mxu0 0.0
    %667 = vmatpush1.msra.mxu0 0.0
    %668 = vmatprep.subr.mxu0 0.0
    %669 = vmatpush1.msra.mxu0 0.0
    %670 = vmatprep.subr.mxu0 0.0
    %671 = vmatpush1.msra.mxu0 0.0
    %672 = vmatprep.mubr.f32.mxu0 0.0
    %673 = vmatmul.mubr.f32.gmra.mrb[0].mxu0 %v472
    %v674 = vpop.f32.mrb[0].mxu0
    %v675 = vadd.f32 0.0, %v674
    %v676 = vpop.f32.mrb[0].mxu0
    %v677 = vadd.f32 0.0, %v676
    %678 = vmatprep.mubr.f32.mxu0 0.0
    %679 = vmatmul.mubr.f32.gmra.mrb[0].mxu0 %v475
    %v680 = vpop.f32.mrb[0].mxu0
    %v681 = vadd.f32 0.0, %v680
    %v682 = vpop.f32.mrb[0].mxu0
    %v683 = vadd.f32 0.0, %v682
    %684 = vmatprep.mubr.f32.mxu0 0.0
    %685 = vmatmul.mubr.f32.gmra.mrb[0].mxu0 %v478
    %v686 = vpop.f32.mrb[0].mxu0
    %v687 = vadd.f32 0.0, %v686
    %v688 = vpop.f32.mrb[0].mxu0
    %v689 = vadd.f32 0.0, %v688
    %690 = vmatprep.mubr.f32.mxu0 0.0
    %691 = vmatmul.mubr.f32.gmra.mrb[0].mxu0 %v481
    %v692 = vpop.f32.mrb[0].mxu0
    %v693 = vadd.f32 0.0, %v692
    %v694 = vpop.f32.mrb[0].mxu0
    %v695 = vadd.f32 0.0, %v694
    %696 = vmatprep.mubr.f32.mxu0 0.0
    %697 = vmatmul.mubr.f32.gmra.mrb[0].mxu0 %v484
    %v698 = vpop.f32.mrb[0].mxu0
    %v699 = vadd.f32 0.0, %v698
    %v700 = vpop.f32.mrb[0].mxu0
    %v701 = vadd.f32 0.0, %v700
    %702 = vmatprep.mubr.f32.mxu0 0.0
    %703 = vmatmul.mubr.f32.gmra.mrb[0].mxu0 %v487
    %v704 = vpop.f32.mrb[0].mxu0
    %v705 = vadd.f32 0.0, %v704
    %v706 = vpop.f32.mrb[0].mxu0
    %v707 = vadd.f32 0.0, %v706
    %708 = vmatprep.mubr.f32.mxu0 0.0
    %709 = vmatmul.mubr.f32.gmra.mrb[0].mxu0 %v490
    %v710 = vpop.f32.mrb[0].mxu0
    %v711 = vadd.f32 0.0, %v710
    %v712 = vpop.f32.mrb[0].mxu0
    %v713 = vadd.f32 0.0, %v712
    %714 = vmatprep.mubr.f32.mxu0 0.0
    %715 = vmatmul.mubr.f32.gmra.mrb[0].mxu0 %v493
    %v716 = vpop.f32.mrb[0].mxu0
    %v717 = vadd.f32 0.0, %v716
    %v718 = vpop.f32.mrb[0].mxu0
    %v719 = vadd.f32 0.0, %v718
    %720 = vdwg.mxu0
    %721 = vst [vmem:[#allocation10] sm:$0xff] %v562
    %722 = vst [vmem:[#allocation10 + $0x8] sm:$0xff] %v564
    %723 = vst [vmem:[#allocation10 + $0x10] sm:$0xff] %v675
    %724 = vst [vmem:[#allocation10 + $0x18] sm:$0xff] %v677
    %725 = vst [vmem:[#allocation10 + $0x20] sm:$0xff] %v568
    %726 = vst [vmem:[#allocation10 + $0x28] sm:$0xff] %v570
    %727 = vst [vmem:[#allocation10 + $0x30] sm:$0xff] %v681
    %728 = vst [vmem:[#allocation10 + $0x38] sm:$0xff] %v683
    %729 = vst [vmem:[#allocation10 + $0x40] sm:$0xff] %v574
    %730 = vst [vmem:[#allocation10 + $0x48] sm:$0xff] %v576
    %731 = vst [vmem:[#allocation10 + $0x50] sm:$0xff] %v687
    %732 = vst [vmem:[#allocation10 + $0x58] sm:$0xff] %v689
    %733 = vst [vmem:[#allocation10 + $0x60] sm:$0xff] %v580
    %734 = vst [vmem:[#allocation10 + $0x68] sm:$0xff] %v582
    %735 = vst [vmem:[#allocation10 + $0x70] sm:$0xff] %v693
    %736 = vst [vmem:[#allocation10 + $0x78] sm:$0xff] %v695
    %737 = vst [vmem:[#allocation10 + $0x80] sm:$0xff] %v586
    %738 = vst [vmem:[#allocation10 + $0x88] sm:$0xff] %v588
    %739 = vst [vmem:[#allocation10 + $0x90] sm:$0xff] %v699
    %740 = vst [vmem:[#allocation10 + $0x98] sm:$0xff] %v701
    %741 = vst [vmem:[#allocation10 + $0xa0] sm:$0xff] %v592
    %742 = vst [vmem:[#allocation10 + $0xa8] sm:$0xff] %v594
    %743 = vst [vmem:[#allocation10 + $0xb0] sm:$0xff] %v705
    %744 = vst [vmem:[#allocation10 + $0xb8] sm:$0xff] %v707
    %745 = vst [vmem:[#allocation10 + $0xc0] sm:$0xff] %v598
    %746 = vst [vmem:[#allocation10 + $0xc8] sm:$0xff] %v600
    %747 = vst [vmem:[#allocation10 + $0xd0] sm:$0xff] %v711
    %748 = vst [vmem:[#allocation10 + $0xd8] sm:$0xff] %v713
    %749 = vst [vmem:[#allocation10 + $0xe0] sm:$0xff] %v604
    %750 = vst [vmem:[#allocation10 + $0xe8] sm:$0xff] %v606
    %751 = vst [vmem:[#allocation10 + $0xf0] sm:$0xff] %v717
    %752 = vst [vmem:[#allocation10 + $0xf8] sm:$0xff] %v719
    // Predicated region
    $region26: #{tpu_custom_call.1} parent=1 // pred_check
      _
    $region27: #{tpu_custom_call.1} parent=1 // pred_check_branch
      %754 = sbr.rel (0) target = $region29
    $region28: #{tpu_custom_call.1} parent=1 // pred_region
      %s756 = ssub.s32 4096, 4096
      %757 = vsyncadd [#allocation6], %s756
      %s758 = sshll.u32 [#allocation10], 4
      %s759 = int_to_ptr.vmem [resolvable:$true] %s758
      %764 = dma.vmem_to_hbm [thread:$0]  %s759, 4096, %s4, [#allocation6], 512, 512, 32
    $region29: #{tpu_custom_call.1} parent=1 // pred_fallthru
      _
    // Predicated region
    $region30: #{tpu_custom_call.1} parent=1 // pred_check
      _
    $region31: #{tpu_custom_call.1} parent=1 // pred_check_branch
      %766 = sbr.rel (0) target = $region33
    $region32: #{tpu_custom_call.1} parent=1 // pred_region
      %767 = dma.done [#allocation6], 4096
    $region33: #{tpu_custom_call.1} parent=1 // pred_fallthru
      _
    %768 = vsyncpa [#allocation5], 1
    %769 = vsyncpa [#allocation8], 1
    %770 = vsyncpa [#allocation6], 1

</llo_original>
